<compile_context>
chip_gen: v7x
topology: tpu7x:2x2x1
jax: 0.10.0
libtpu: 0.0.40
codegen_flags: <defaults>
</compile_context>

<pallas_src>
import functools
import numpy as np

import jax
import jax.numpy as jnp
from jax import lax
from jax.experimental import pallas as pl
from jax.experimental.pallas import tpu as pltpu


LANE = 128      # lane width
MAX_TK = 512    # max rows of the feature table per reduction step


def _round_up(x, m):
    return ((x + m - 1) // m) * m


def _pick_bn(n):
    """Node-block size: 256 on 256-wide-MXU parts when >=2 blocks remain, else 128."""
    try:
        kind = jax.devices()[0].device_kind.lower()
    except Exception:
        kind = ""
    narrow_mxu = any(t in kind for t in ("v2", "v3", "v4", "v5"))
    if (not narrow_mxu) and _round_up(max(n, 1), 256) // 256 >= 2:
        return 256
    return 128


def _mean_agg_kernel(tiles_ref, ntiles_ref, idx_ref, scale_ref, feat_ref, out_ref,
                     *, s_max, tk, max_tiles):
    """One (BN, D) output tile, accumulated over the *touched* K-tiles only.

    tiles_ref : SMEM (n_blocks*max_tiles,) i32 -- per-block touched tile ids (flat)
    ntiles_ref: SMEM (n_blocks,)           i32 -- #valid entries per block
    idx_ref   : VMEM (BN, S)  i32 -- sampled neighbor row indices (-1 padded)
    scale_ref : VMEM (BN, 1)  f32 -- per-row 1/cnt (0 for empty/padded rows)
    feat_ref  : VMEM (tk, D)  f32 -- one touched K-tile of the feature table
    out_ref   : VMEM (BN, D)  f32 -- accumulator tile (resident across K axis)
    """
    i = pl.program_id(0)
    kk = pl.program_id(1)
    bn = idx_ref.shape[0]

    @pl.when(kk == 0)
    def _init():
        out_ref[...] = jnp.zeros_like(out_ref)

    @pl.when(kk < ntiles_ref[i])
    def _accumulate():
        k_base = tiles_ref[i * max_tiles + kk] * tk
        idx_local = idx_ref[...] - k_base                       # (BN, S) i32
        kcol = lax.broadcasted_iota(jnp.int32, (bn, tk), 1)     # tile-local columns
        # Hit-count gather matrix: wmat[r, c] = #{s : idx_local[r, s] == c}.
        # Padded samples (idx = -1) and out-of-tile samples never match.
        wmat = jnp.zeros((bn, tk), jnp.float32)
        for s in range(s_max):                                  # S is small/static
            wmat = wmat + (idx_local[:, s:s + 1] == kcol).astype(jnp.float32)
        # Single MXU matmul per (node-block, touched K-tile).
        out_ref[...] += jnp.dot(wmat, feat_ref[...],
                                preferred_element_type=jnp.float32)

    @pl.when(kk == pl.num_programs(1) - 1)
    def _finalize():
        out_ref[...] = out_ref[...] * scale_ref[...]            # per-row 1/cnt


def _pallas_mean_aggregate(features, idx_rows, scale_rows, *, max_tk=MAX_TK):
    """features: (n_prev, D) f32 jnp; idx_rows: (n, S) i32 np (-1 pad); scale_rows: (n,) f32 np."""
    n_prev, feat_dim = features.shape
    n, s_max = idx_rows.shape

    bn = _pick_bn(n)
    n_pad = _round_up(max(n, 1), bn)
    n_blocks = n_pad // bn

    idx = np.full((n_pad, s_max), -1, dtype=np.int32)
    idx[:n] = idx_rows
    scale = np.zeros((n_pad, 1), dtype=np.float32)
    scale[:n, 0] = scale_rows

    # Feature table: pad rows to a multiple of tk; avoid lane padding when
    # feat_dim <= 128 (block last dim == full array dim is legal).
    d_pad = feat_dim if feat_dim <= LANE else _round_up(feat_dim, LANE)
    tk = min(max_tk, _round_up(max(n_prev, 8), 8))
    n_prev_pad = _round_up(n_prev, tk)
    feat_p = jnp.zeros((n_prev_pad, d_pad), jnp.float32)
    feat_p = feat_p.at[:n_prev, :feat_dim].set(features.astype(jnp.float32))

    # Per-node-block K-tile schedule (scalar prefetch): only the tiles that hold
    # at least one sampled row are streamed; padded slots repeat the last valid
    # tile (in-range DMA, compute skipped via ntiles).
    tile_lists = []
    for b in range(n_blocks):
        blk = idx[b * bn:(b + 1) * bn]
        valid = blk[blk >= 0]
        tids = np.unique(valid // tk) if valid.size else np.zeros((0,), np.int64)
        tile_lists.append(tids.astype(np.int32))
    max_tiles = max(1, max(len(t) for t in tile_lists))
    tiles = np.zeros((n_blocks, max_tiles), dtype=np.int32)
    ntiles = np.zeros((n_blocks,), dtype=np.int32)
    for b, tids in enumerate(tile_lists):
        m = len(tids)
        ntiles[b] = m
        if m > 0:
            tiles[b, :m] = tids
            tiles[b, m:] = tids[-1]
    tiles_flat = tiles.reshape(-1)  # flat 1-D SMEM (no 2-D SMEM padding blow-up)

    grid = (n_blocks, max_tiles)

    # VMEM budget: double-buffered feat tile, out tile, lane-padded idx/scale
    # tiles, materialized wmat intermediates, plus Mosaic internal scratch.
    vmem_bytes = (
        2 * tk * d_pad * 4
        + 2 * bn * d_pad * 4
        + 2 * bn * _round_up(s_max, LANE) * 4
        + 2 * bn * LANE * 4
        + 3 * bn * tk * 4
        + (8 << 20)
    )
    vmem_bytes = max(int(vmem_bytes), 32 << 20)

    kernel = functools.partial(_mean_agg_kernel, s_max=s_max, tk=tk,
                               max_tiles=max_tiles)

    out_pad = pl.pallas_call(
        kernel,
        out_shape=jax.ShapeDtypeStruct((n_pad, d_pad), jnp.float32),
        grid_spec=pltpu.PrefetchScalarGridSpec(
            num_scalar_prefetch=2,
            grid=grid,
            in_specs=[
                pl.BlockSpec((bn, s_max), lambda i, k, t, nt: (i, 0)),        # idx
                pl.BlockSpec((bn, 1), lambda i, k, t, nt: (i, 0)),            # scale
                pl.BlockSpec((tk, d_pad),
                             lambda i, k, t, nt: (t[i * max_tiles + k], 0)),  # feat tile
            ],
            out_specs=pl.BlockSpec((bn, d_pad), lambda i, k, t, nt: (i, 0)),
        ),
        compiler_params=pltpu.CompilerParams(
            dimension_semantics=("parallel", "arbitrary"),
            vmem_limit_bytes=int(vmem_bytes),
        ),
    )(jnp.asarray(tiles_flat), jnp.asarray(ntiles),
      jnp.asarray(idx), jnp.asarray(scale), feat_p)

    return out_pad[:n, :feat_dim]


def aggregator_forward(features, nodes, mapping, rows, dist, init_mapping,
                       num_samples=5, max_tk=MAX_TK):
    """Mirrors Aggregator.forward (non-LSTM, non-MeanAggregator-with-dist branch)."""
    _choice, _len, _min = (np.random.choice, len, min)

    # ---- host-side glue: mapping + neighbor sampling (same as the PyTorch code) ----
    mapped_rows = [np.array([mapping[v] for v in row], dtype=np.int64)
                   for row in rows]
    if num_samples == -1:
        sampled_rows = list(mapped_rows)
    else:
        sampled_rows = []
        inds = [_choice(_len(row), _min(_len(row), num_samples), _len(row) < num_samples)
                if _len(row) > 0 else np.array([], dtype=np.int64)
                for row in mapped_rows]
        for i in range(len(inds)):
            sampled_rows.append(mapped_rows[i][inds[i]] if _len(mapped_rows[i]) > 0
                                else np.array([], dtype=np.int64))

    n = _len(nodes)
    if num_samples != -1:
        s_max = max(1, num_samples)
    else:
        s_max = max(1, max((_len(sr) for sr in sampled_rows), default=1))

    # Per-node sampled indices (-1 padded) + per-row mean scale (1/cnt or 0).
    idx_rows = np.full((n, s_max), -1, dtype=np.int32)
    scale_rows = np.zeros((n,), dtype=np.float32)
    for i in range(n):
        sr = np.asarray(sampled_rows[i], dtype=np.int64)
        c = len(sr)
        if c > 0:
            idx_rows[i, :c] = sr.astype(np.int32)
            scale_rows[i] = 1.0 / float(c)

    # ---- Pallas kernel: fused gather + mean as hit-count matmul + 1/cnt epilogue ----
    out = _pallas_mean_aggregate(
        jnp.asarray(features, jnp.float32), idx_rows, scale_rows, max_tk=max_tk)
    # TODO(synk): MeanAggregator's dist-weighted self+neighbor branch and the
    # LSTMAggregator (2*output_dim) branch are not implemented here.
    return out, sampled_rows  # sampled_rows returned for the reference check


if __name__ == "__main__":
    np.random.seed(0)
    key = jax.random.PRNGKey(0)

    # small synthetic graph / computation-graph layer
    n_prev = 16          # nodes in the previous layer
    feat_dim = 32        # input_dim == output_dim
    n_nodes = 8          # nodes in the current layer
    num_samples = 5

    features = jax.random.normal(key, (n_prev, feat_dim), dtype=jnp.float32)

    nodes = np.arange(n_nodes)
    mapping = {v: v for v in range(n_prev)}          # previous layer = [0..15]
    init_mapping = dict(mapping)
    rng = np.random.default_rng(0)
    rows = []
    for i in range(n_nodes):
        if i == 3:
            rows.append(np.array([], dtype=np.int64))  # isolated node -> zero row
        else:
            deg = int(rng.integers(1, 8))
            rows.append(rng.choice(n_prev, size=deg, replace=False))
    dist = np.abs(rng.standard_normal((n_prev, n_prev))).astype(np.float32)

    feats_np = np.asarray(features)

    def ref_mean(sampled):
        ref = np.zeros((n_nodes, feat_dim), dtype=np.float32)
        for i in range(n_nodes):
            if len(sampled[i]) != 0:
                ref[i, :] = feats_np[sampled[i], :].mean(axis=0)
        return ref

    # 1) default config (single K-tile at this size)
    out, sampled_rows = aggregator_forward(
        features, nodes, mapping, rows, dist, init_mapping, num_samples=num_samples)
    out = jax.block_until_ready(out)
    np.testing.assert_allclose(np.asarray(out), ref_mean(sampled_rows),
                               rtol=1e-5, atol=1e-5)

    # 2) tiny K-tile to exercise the multi-tile + scalar-prefetch skip path
    out2, sampled_rows2 = aggregator_forward(
        features, nodes, mapping, rows, dist, init_mapping,
        num_samples=num_samples, max_tk=8)
    out2 = jax.block_until_ready(out2)
    np.testing.assert_allclose(np.asarray(out2), ref_mean(sampled_rows2),
                               rtol=1e-5, atol=1e-5)

    print("KERNEL_OK")
</pallas_src>

<mosaic_0001>
module attributes {stable_mosaic.version = 11 : i64} {
  func.func @_mean_agg_kernel(%arg0: i32, %arg1: i32, %arg2: memref<1xi32, #tpu.memory_space<smem>>, %arg3: memref<1xi32, #tpu.memory_space<smem>>, %arg4: memref<128x5xi32, #tpu.memory_space<vmem>>, %arg5: memref<128x1xf32, #tpu.memory_space<vmem>>, %arg6: memref<16x32xf32, #tpu.memory_space<vmem>>, %arg7: memref<128x32xf32, #tpu.memory_space<vmem>>) attributes {dimension_semantics = [#tpu.dimension_semantics<parallel>, #tpu.dimension_semantics<arbitrary>], iteration_bounds = array<i64: 1, 1>, scalar_prefetch = 2 : i64, scratch_operands = 0 : i64, tpu.core_type = #tpu.core_type<tc>, window_params = [{transform_indices = @transform_0, window_bounds = array<i64: 128, 5>}, {transform_indices = @transform_1, window_bounds = array<i64: 128, 1>}, {transform_indices = @transform_2, window_bounds = array<i64: 16, 32>}, {transform_indices = @transform_3, window_bounds = array<i64: 128, 32>}]} {
    %c0_i32 = arith.constant 0 : i32
    %0 = arith.cmpi eq, %arg1, %c0_i32 : i32
    %1 = arith.extui %0 : i1 to i32
    %c0_i32_0 = arith.constant 0 : i32
    %2 = arith.cmpi ne, %1, %c0_i32_0 : i32
    scf.if %2 {
      %cst = arith.constant 0.000000e+00 : f32
      %11 = vector.broadcast %cst : f32 to vector<128x32xf32>
      %c0 = arith.constant 0 : index
      %c0_4 = arith.constant 0 : index
      %12 = vector.load %arg7[%c0, %c0_4] : memref<128x32xf32, #tpu.memory_space<vmem>>, vector<128x32xf32>
      tpu.vector_store %arg7[%c0, %c0_4], %11 {strides = array<i32>} : memref<128x32xf32, #tpu.memory_space<vmem>>, vector<128x32xf32>,
    } else {
    }
    %3 = arith.index_cast %arg0 : i32 to index
    %4 = memref.load %arg3[%3] : memref<1xi32, #tpu.memory_space<smem>>
    %5 = arith.cmpi slt, %arg1, %4 : i32
    %6 = arith.extui %5 : i1 to i32
    %c0_i32_1 = arith.constant 0 : i32
    %7 = arith.cmpi ne, %6, %c0_i32_1 : i32
    scf.if %7 {
      %c1_i32 = arith.constant 1 : i32
      %11 = arith.muli %arg0, %c1_i32 : i32
      %12 = arith.addi %11, %arg1 : i32
      %13 = arith.index_cast %12 : i32 to index
      %14 = memref.load %arg2[%13] : memref<1xi32, #tpu.memory_space<smem>>
      %c16_i32 = arith.constant 16 : i32
      %15 = arith.muli %14, %c16_i32 : i32
      %c0 = arith.constant 0 : index
      %c0_4 = arith.constant 0 : index
      %16 = vector.load %arg4[%c0, %c0_4] : memref<128x5xi32, #tpu.memory_space<vmem>>, vector<128x5xi32>
      %17 = vector.broadcast %15 : i32 to vector<128x5xi32>
      %18 = arith.subi %16, %17 : vector<128x5xi32>
      %19 = tpu.iota {dimensions = array<i32: 1>} : vector<128x16xi32>
      %cst = arith.constant 0.000000e+00 : f32
      %20 = vector.broadcast %cst : f32 to vector<128x16xf32>
      %21 = vector.extract_strided_slice %18 {offsets = [0, 0], sizes = [128, 1], strides = [1, 1]} : vector<128x5xi32> to vector<128x1xi32>
      %22 = vector.broadcast %21 : vector<128x1xi32> to vector<128x16xi32>
      %23 = arith.cmpi eq, %22, %19 : vector<128x16xi32>
      %24 = arith.extui %23 : vector<128x16xi1> to vector<128x16xi32>
      %25 = arith.sitofp %24 : vector<128x16xi32> to vector<128x16xf32>
      %26 = arith.addf %20, %25 : vector<128x16xf32>
      %27 = vector.extract_strided_slice %18 {offsets = [0, 1], sizes = [128, 1], strides = [1, 1]} : vector<128x5xi32> to vector<128x1xi32>
      %28 = vector.broadcast %27 : vector<128x1xi32> to vector<128x16xi32>
      %29 = arith.cmpi eq, %28, %19 : vector<128x16xi32>
      %30 = arith.extui %29 : vector<128x16xi1> to vector<128x16xi32>
      %31 = arith.sitofp %30 : vector<128x16xi32> to vector<128x16xf32>
      %32 = arith.addf %26, %31 : vector<128x16xf32>
      %33 = vector.extract_strided_slice %18 {offsets = [0, 2], sizes = [128, 1], strides = [1, 1]} : vector<128x5xi32> to vector<128x1xi32>
      %34 = vector.broadcast %33 : vector<128x1xi32> to vector<128x16xi32>
      %35 = arith.cmpi eq, %34, %19 : vector<128x16xi32>
      %36 = arith.extui %35 : vector<128x16xi1> to vector<128x16xi32>
      %37 = arith.sitofp %36 : vector<128x16xi32> to vector<128x16xf32>
      %38 = arith.addf %32, %37 : vector<128x16xf32>
      %39 = vector.extract_strided_slice %18 {offsets = [0, 3], sizes = [128, 1], strides = [1, 1]} : vector<128x5xi32> to vector<128x1xi32>
      %40 = vector.broadcast %39 : vector<128x1xi32> to vector<128x16xi32>
      %41 = arith.cmpi eq, %40, %19 : vector<128x16xi32>
      %42 = arith.extui %41 : vector<128x16xi1> to vector<128x16xi32>
      %43 = arith.sitofp %42 : vector<128x16xi32> to vector<128x16xf32>
      %44 = arith.addf %38, %43 : vector<128x16xf32>
      %45 = vector.extract_strided_slice %18 {offsets = [0, 4], sizes = [128, 1], strides = [1, 1]} : vector<128x5xi32> to vector<128x1xi32>
      %46 = vector.broadcast %45 : vector<128x1xi32> to vector<128x16xi32>
      %47 = arith.cmpi eq, %46, %19 : vector<128x16xi32>
      %48 = arith.extui %47 : vector<128x16xi1> to vector<128x16xi32>
      %49 = arith.sitofp %48 : vector<128x16xi32> to vector<128x16xf32>
      %50 = arith.addf %44, %49 : vector<128x16xf32>
      %c0_5 = arith.constant 0 : index
      %c0_6 = arith.constant 0 : index
      %51 = vector.load %arg7[%c0_5, %c0_6] : memref<128x32xf32, #tpu.memory_space<vmem>>, vector<128x32xf32>
      %c0_7 = arith.constant 0 : index
      %c0_8 = arith.constant 0 : index
      %52 = vector.load %arg6[%c0_7, %c0_8] : memref<16x32xf32, #tpu.memory_space<vmem>>, vector<16x32xf32>
      %cst_9 = arith.constant dense<0.000000e+00> : vector<128x32xf32>
      %53 = tpu.matmul %50, %52, %cst_9 {dimension_numbers = #tpu.dot_dimension_numbers<[1], [0], [0], [1], [0, 0, 1, 1], [], []>} : vector<128x16xf32>, vector<16x32xf32>, vector<128x32xf32> -> vector<128x32xf32>
      %54 = arith.addf %51, %53 : vector<128x32xf32>
      %c0_10 = arith.constant 0 : index
      %c0_11 = arith.constant 0 : index
      %55 = vector.load %arg7[%c0_10, %c0_11] : memref<128x32xf32, #tpu.memory_space<vmem>>, vector<128x32xf32>
      tpu.vector_store %arg7[%c0_10, %c0_11], %54 {strides = array<i32>} : memref<128x32xf32, #tpu.memory_space<vmem>>, vector<128x32xf32>,
    } else {
    }
    %c0_i32_2 = arith.constant 0 : i32
    %8 = arith.cmpi eq, %arg1, %c0_i32_2 : i32
    %9 = arith.extui %8 : i1 to i32
    %c0_i32_3 = arith.constant 0 : i32
    %10 = arith.cmpi ne, %9, %c0_i32_3 : i32
    scf.if %10 {
      %c0 = arith.constant 0 : index
      %c0_4 = arith.constant 0 : index
      %11 = vector.load %arg7[%c0, %c0_4] : memref<128x32xf32, #tpu.memory_space<vmem>>, vector<128x32xf32>
      %c0_5 = arith.constant 0 : index
      %c0_6 = arith.constant 0 : index
      %12 = vector.load %arg5[%c0_5, %c0_6] : memref<128x1xf32, #tpu.memory_space<vmem>>, vector<128x1xf32>
      %13 = vector.broadcast %12 : vector<128x1xf32> to vector<128x32xf32>
      %14 = arith.mulf %11, %13 : vector<128x32xf32>
      %c0_7 = arith.constant 0 : index
      %c0_8 = arith.constant 0 : index
      %15 = vector.load %arg7[%c0_7, %c0_8] : memref<128x32xf32, #tpu.memory_space<vmem>>, vector<128x32xf32>
      tpu.vector_store %arg7[%c0_7, %c0_8], %14 {strides = array<i32>} : memref<128x32xf32, #tpu.memory_space<vmem>>, vector<128x32xf32>,
    } else {
    }
    return
  }
  func.func @transform_0(%arg0: i32, %arg1: i32, %arg2: memref<1xi32, #tpu.memory_space<smem>>, %arg3: memref<1xi32, #tpu.memory_space<smem>>) -> (i32, i32) {
    %c0_i32 = arith.constant 0 : i32
    %c0_i32_0 = arith.constant 0 : i32
    return %arg0, %c0_i32 : i32, i32
  }
  func.func @transform_1(%arg0: i32, %arg1: i32, %arg2: memref<1xi32, #tpu.memory_space<smem>>, %arg3: memref<1xi32, #tpu.memory_space<smem>>) -> (i32, i32) {
    %c0_i32 = arith.constant 0 : i32
    %c0_i32_0 = arith.constant 0 : i32
    return %arg0, %c0_i32 : i32, i32
  }
  func.func @transform_2(%arg0: i32, %arg1: i32, %arg2: memref<1xi32, #tpu.memory_space<smem>>, %arg3: memref<1xi32, #tpu.memory_space<smem>>) -> (i32, i32) {
    %c1_i32 = arith.constant 1 : i32
    %0 = arith.muli %arg0, %c1_i32 : i32
    %1 = arith.addi %0, %arg1 : i32
    %2 = arith.index_cast %1 : i32 to index
    %3 = memref.load %arg2[%2] : memref<1xi32, #tpu.memory_space<smem>>
    %c0_i32 = arith.constant 0 : i32
    %c0_i32_0 = arith.constant 0 : i32
    return %3, %c0_i32 : i32, i32
  }
  func.func @transform_3(%arg0: i32, %arg1: i32, %arg2: memref<1xi32, #tpu.memory_space<smem>>, %arg3: memref<1xi32, #tpu.memory_space<smem>>) -> (i32, i32) {
    %c0_i32 = arith.constant 0 : i32
    %c0_i32_0 = arith.constant 0 : i32
    return %arg0, %c0_i32 : i32, i32
  }
}

</mosaic_0001>

<llo_original>
// kernel: tpu_custom_call.1
$region0: #{tpu_custom_call.1}
  #allocation0 [shape = 'u32[]', space=smem, size = 0x4, offset = 0x4, fixed_abs, tag = 'smem constant byte address 0x4 - core index']
  #allocation1 [shape = 'u32[144,128]{1,0:T(1,128)}', space=vmem, size = 0x12000, scoped, tag = 'internal scratch']
  #allocation2 [shape = 's32[1]{0}', space=sflag, size = 0x4, scoped, tag = 'scoped memory for tpu_custom_call.1']
  #allocation3 [shape = 's32[1]{0:T(128)S(6)}', space=smem, size = 0x200, scoped, tag = 'prefetched SMEM operand 0']
  #allocation4 [shape = 's32[1]{0:T(128)S(6)}', space=smem, size = 0x200, scoped, tag = 'prefetched SMEM operand 1']
  %s0 = inlined_call_operand.<no memory space> [shape: s32[1], index: 0, kind: input, shape index: {}]
  %s1 = inlined_call_operand.<no memory space> [shape: s32[1], index: 1, kind: input, shape index: {}]
  %s2 = inlined_call_operand.vmem [shape: s32[128,5], index: 2, kind: input, shape index: {}]
  %s3 = inlined_call_operand.vmem [shape: f32[128,1], index: 3, kind: input, shape index: {}]
  %s4 = inlined_call_operand.vmem [shape: f32[16,32], index: 4, kind: input, shape index: {}]
  %s5 = inlined_call_operand.vmem [shape: f32[128,32], index: 5, kind: output, shape index: {}]
  %s6 = sld [smem:[#allocation0]]
  $region34: #{tpu_custom_call.1} parent=0
    _
  %s8 = ssub.s32 1, %s6
  %s9 = scalar_select 0, %s8, %s6
  %10 = sst [smem:[#allocation3]] %s0
  %11 = sst [smem:[#allocation4]] %s1
  // Predicated region
  $region2: #{tpu_custom_call.1} parent=0 // pred_check
    _
  $region3: #{tpu_custom_call.1} parent=0 // pred_check_branch
    %13 = sbr.rel (0) target = $region5
  $region4: #{tpu_custom_call.1} parent=0 // pred_region
    _
  $region5: #{tpu_custom_call.1} parent=0 // pred_fallthru
    _
  // Predicated region
  $region6: #{tpu_custom_call.1} parent=0 // pred_check
    _
  $region7: #{tpu_custom_call.1} parent=0 // pred_check_branch
    %15 = sbr.rel (0) target = $region9
  $region8: #{tpu_custom_call.1} parent=0 // pred_region
    _
  $region9: #{tpu_custom_call.1} parent=0 // pred_fallthru
    _
  // Predicated region
  $region10: #{tpu_custom_call.1} parent=0 // pred_check
    _
  $region11: #{tpu_custom_call.1} parent=0 // pred_check_branch
    %17 = sbr.rel (0) target = $region13
  $region12: #{tpu_custom_call.1} parent=0 // pred_region
    %s18 = sadd.s32 0, 0
    %s19 = sld [smem:[#allocation3 + %s18]]
    %s20 = smul.u32 2, %s19
    %p21 = scmp.lt.s32.totalorder %s20, 1
    %s22 = scalar_select %p21, %s20, 1
    %s23 = smul.addr %s22, 8
    %s24 = scalar_lea.vmem %s4, %s23
    %s25 = sadd.s32 0, 0
    %s26 = sld [smem:[#allocation3 + %s25]]
    %s27 = smul.u32 2, %s26
  $region13: #{tpu_custom_call.1} parent=0 // pred_fallthru
    _
  %s28 = sadd.s32 0, 0
  %s29 = sld [smem:[#allocation3 + %s28]]
  %s30 = smul.u32 2, %s29
  %p31 = scmp.lt.s32.totalorder %s30, 1
  %s32 = scalar_select %p31, %s30, 1
  %s33 = smul.addr %s32, 8
  %s34 = scalar_lea.vmem %s4, %s33
  %s35 = sadd.s32 0, 0
  %s36 = sld [smem:[#allocation3 + %s35]]
  %s37 = smul.u32 2, %s36
  %p38 = scmp.lt.s32.totalorder %s37, 1
  %s39 = scalar_select %p38, %s37, 1
  %s40 = smul.addr %s39, 8
  %s41 = scalar_lea.vmem %s4, %s40
  %s42 = sadd.s32 0, 0
  %s43 = sld [smem:[#allocation3 + %s42]]
  %s44 = smul.u32 2, %s43
  %p45 = scmp.eq.s32.totalorder 0, 0
  // Predicated region
  $region14: #{tpu_custom_call.1} parent=0 // pred_check
    %p46 = pneg %p45
  $region15: #{tpu_custom_call.1} parent=0 // pred_check_branch
    %48 = sbr.rel (%p46) target = $region17
  $region16: #{tpu_custom_call.1} parent=0 // pred_region
    %vm49 = vcmask 261120
    %50 = vst.msk [vmem:[%s5] sm:$0xff] %vm49, 0.0
    %51 = vst.msk [vmem:[%s5 + $0x8] sm:$0xff] %vm49, 0.0
    %52 = vst.msk [vmem:[%s5 + $0x10] sm:$0xff] %vm49, 0.0
    %53 = vst.msk [vmem:[%s5 + $0x18] sm:$0xff] %vm49, 0.0
    %54 = vst.msk [vmem:[%s5 + $0x20] sm:$0xff] %vm49, 0.0
    %55 = vst.msk [vmem:[%s5 + $0x28] sm:$0xff] %vm49, 0.0
    %56 = vst.msk [vmem:[%s5 + $0x30] sm:$0xff] %vm49, 0.0
    %57 = vst.msk [vmem:[%s5 + $0x38] sm:$0xff] %vm49, 0.0
    %58 = vst.msk [vmem:[%s5 + $0x40] sm:$0xff] %vm49, 0.0
    %59 = vst.msk [vmem:[%s5 + $0x48] sm:$0xff] %vm49, 0.0
    %60 = vst.msk [vmem:[%s5 + $0x50] sm:$0xff] %vm49, 0.0
    %61 = vst.msk [vmem:[%s5 + $0x58] sm:$0xff] %vm49, 0.0
    %62 = vst.msk [vmem:[%s5 + $0x60] sm:$0xff] %vm49, 0.0
    %63 = vst.msk [vmem:[%s5 + $0x68] sm:$0xff] %vm49, 0.0
    %64 = vst.msk [vmem:[%s5 + $0x70] sm:$0xff] %vm49, 0.0
    %65 = vst.msk [vmem:[%s5 + $0x78] sm:$0xff] %vm49, 0.0
  $region17: #{tpu_custom_call.1} parent=0 // pred_fallthru
    _
  %s66 = sld [smem:[#allocation4]]
  %p67 = scmp.lt.s32.totalorder 0, %s66
  // Predicated region
  $region18: #{tpu_custom_call.1} parent=0 // pred_check
    %p68 = pneg %p67
  $region19: #{tpu_custom_call.1} parent=0 // pred_check_branch
    %70 = sbr.rel (%p68) target = $region21
  $region20: #{tpu_custom_call.1} parent=0 // pred_region
    %s71 = sadd.s32 0, 0
    %s72 = sld [smem:[#allocation3 + %s71]]
    %s73 = smul.u32 %s72, 16
    %v74 = vld [vmem:[%s2] sm:$0xff]
    %v75 = vld [vmem:[%s2 + $0x8] sm:$0xff]
    %v76 = vld [vmem:[%s2 + $0x10] sm:$0xff]
    %v77 = vld [vmem:[%s2 + $0x18] sm:$0xff]
    %v78 = vld [vmem:[%s2 + $0x20] sm:$0xff]
    %v79 = vld [vmem:[%s2 + $0x28] sm:$0xff]
    %v80 = vld [vmem:[%s2 + $0x30] sm:$0xff]
    %v81 = vld [vmem:[%s2 + $0x38] sm:$0xff]
    %v82 = vld [vmem:[%s2 + $0x40] sm:$0xff]
    %v83 = vld [vmem:[%s2 + $0x48] sm:$0xff]
    %v84 = vld [vmem:[%s2 + $0x50] sm:$0xff]
    %v85 = vld [vmem:[%s2 + $0x58] sm:$0xff]
    %v86 = vld [vmem:[%s2 + $0x60] sm:$0xff]
    %v87 = vld [vmem:[%s2 + $0x68] sm:$0xff]
    %v88 = vld [vmem:[%s2 + $0x70] sm:$0xff]
    %v89 = vld [vmem:[%s2 + $0x78] sm:$0xff]
    %v90 = vstv %s73
    %v91 = vsub.s32 %v74, %v90
    %v92 = vsub.s32 %v75, %v90
    %v93 = vsub.s32 %v76, %v90
    %v94 = vsub.s32 %v77, %v90
    %v95 = vsub.s32 %v78, %v90
    %v96 = vsub.s32 %v79, %v90
    %v97 = vsub.s32 %v80, %v90
    %v98 = vsub.s32 %v81, %v90
    %v99 = vsub.s32 %v82, %v90
    %v100 = vsub.s32 %v83, %v90
    %v101 = vsub.s32 %v84, %v90
    %v102 = vsub.s32 %v85, %v90
    %v103 = vsub.s32 %v86, %v90
    %v104 = vsub.s32 %v87, %v90
    %v105 = vsub.s32 %v88, %v90
    %v106 = vsub.s32 %v89, %v90
    %v107 = vlaneseq
    %v108 = vand.u32 %v107, 127
    %109 = vset.pattern.permute.xlu0 0
    %110 = vperm.xlu0 %109, %v91
    %v111 = vpop.permute.xlu0 %110
    %112 = vset.pattern.permute.xlu0 0
    %113 = vperm.xlu0 %112, %v92
    %v114 = vpop.permute.xlu0 %113
    %115 = vset.pattern.permute.xlu0 0
    %116 = vperm.xlu0 %115, %v93
    %v117 = vpop.permute.xlu0 %116
    %118 = vset.pattern.permute.xlu0 0
    %119 = vperm.xlu0 %118, %v94
    %v120 = vpop.permute.xlu0 %119
    %121 = vset.pattern.permute.xlu0 0
    %122 = vperm.xlu0 %121, %v95
    %v123 = vpop.permute.xlu0 %122
    %124 = vset.pattern.permute.xlu0 0
    %125 = vperm.xlu0 %124, %v96
    %v126 = vpop.permute.xlu0 %125
    %127 = vset.pattern.permute.xlu0 0
    %128 = vperm.xlu0 %127, %v97
    %v129 = vpop.permute.xlu0 %128
    %130 = vset.pattern.permute.xlu0 0
    %131 = vperm.xlu0 %130, %v98
    %v132 = vpop.permute.xlu0 %131
    %133 = vset.pattern.permute.xlu0 0
    %134 = vperm.xlu0 %133, %v99
    %v135 = vpop.permute.xlu0 %134
    %136 = vset.pattern.permute.xlu0 0
    %137 = vperm.xlu0 %136, %v100
    %v138 = vpop.permute.xlu0 %137
    %139 = vset.pattern.permute.xlu0 0
    %140 = vperm.xlu0 %139, %v101
    %v141 = vpop.permute.xlu0 %140
    %142 = vset.pattern.permute.xlu0 0
    %143 = vperm.xlu0 %142, %v102
    %v144 = vpop.permute.xlu0 %143
    %145 = vset.pattern.permute.xlu0 0
    %146 = vperm.xlu0 %145, %v103
    %v147 = vpop.permute.xlu0 %146
    %148 = vset.pattern.permute.xlu0 0
    %149 = vperm.xlu0 %148, %v104
    %v150 = vpop.permute.xlu0 %149
    %151 = vset.pattern.permute.xlu0 0
    %152 = vperm.xlu0 %151, %v105
    %v153 = vpop.permute.xlu0 %152
    %154 = vset.pattern.permute.xlu0 0
    %155 = vperm.xlu0 %154, %v106
    %v156 = vpop.permute.xlu0 %155
    %vm157 = vcmp.eq.s32.totalorder %v111, %v108
    %vm158 = vcmp.eq.s32.totalorder %v114, %v108
    %vm159 = vcmp.eq.s32.totalorder %v117, %v108
    %vm160 = vcmp.eq.s32.totalorder %v120, %v108
    %vm161 = vcmp.eq.s32.totalorder %v123, %v108
    %vm162 = vcmp.eq.s32.totalorder %v126, %v108
    %vm163 = vcmp.eq.s32.totalorder %v129, %v108
    %vm164 = vcmp.eq.s32.totalorder %v132, %v108
    %vm165 = vcmp.eq.s32.totalorder %v135, %v108
    %vm166 = vcmp.eq.s32.totalorder %v138, %v108
    %vm167 = vcmp.eq.s32.totalorder %v141, %v108
    %vm168 = vcmp.eq.s32.totalorder %v144, %v108
    %vm169 = vcmp.eq.s32.totalorder %v147, %v108
    %vm170 = vcmp.eq.s32.totalorder %v150, %v108
    %vm171 = vcmp.eq.s32.totalorder %v153, %v108
    %vm172 = vcmp.eq.s32.totalorder %v156, %v108
    %v173 = vsel %vm157, 1, 0
    %v174 = vsel %vm158, 1, 0
    %v175 = vsel %vm159, 1, 0
    %v176 = vsel %vm160, 1, 0
    %v177 = vsel %vm161, 1, 0
    %v178 = vsel %vm162, 1, 0
    %v179 = vsel %vm163, 1, 0
    %v180 = vsel %vm164, 1, 0
    %v181 = vsel %vm165, 1, 0
    %v182 = vsel %vm166, 1, 0
    %v183 = vsel %vm167, 1, 0
    %v184 = vsel %vm168, 1, 0
    %v185 = vsel %vm169, 1, 0
    %v186 = vsel %vm170, 1, 0
    %v187 = vsel %vm171, 1, 0
    %v188 = vsel %vm172, 1, 0
    %v189 = vcvt.s32.f32 %v173
    %v190 = vcvt.s32.f32 %v174
    %v191 = vcvt.s32.f32 %v175
    %v192 = vcvt.s32.f32 %v176
    %v193 = vcvt.s32.f32 %v177
    %v194 = vcvt.s32.f32 %v178
    %v195 = vcvt.s32.f32 %v179
    %v196 = vcvt.s32.f32 %v180
    %v197 = vcvt.s32.f32 %v181
    %v198 = vcvt.s32.f32 %v182
    %v199 = vcvt.s32.f32 %v183
    %v200 = vcvt.s32.f32 %v184
    %v201 = vcvt.s32.f32 %v185
    %v202 = vcvt.s32.f32 %v186
    %v203 = vcvt.s32.f32 %v187
    %v204 = vcvt.s32.f32 %v188
    %v205 = vadd.f32 %v189, 0.0
    %v206 = vadd.f32 %v190, 0.0
    %v207 = vadd.f32 %v191, 0.0
    %v208 = vadd.f32 %v192, 0.0
    %v209 = vadd.f32 %v193, 0.0
    %v210 = vadd.f32 %v194, 0.0
    %v211 = vadd.f32 %v195, 0.0
    %v212 = vadd.f32 %v196, 0.0
    %v213 = vadd.f32 %v197, 0.0
    %v214 = vadd.f32 %v198, 0.0
    %v215 = vadd.f32 %v199, 0.0
    %v216 = vadd.f32 %v200, 0.0
    %v217 = vadd.f32 %v201, 0.0
    %v218 = vadd.f32 %v202, 0.0
    %v219 = vadd.f32 %v203, 0.0
    %v220 = vadd.f32 %v204, 0.0
    %221 = vset.pattern.permute.xlu0 1
    %222 = vperm.xlu0 %221, %v91
    %v223 = vpop.permute.xlu0 %222
    %224 = vset.pattern.permute.xlu0 1
    %225 = vperm.xlu0 %224, %v92
    %v226 = vpop.permute.xlu0 %225
    %227 = vset.pattern.permute.xlu0 1
    %228 = vperm.xlu0 %227, %v93
    %v229 = vpop.permute.xlu0 %228
    %230 = vset.pattern.permute.xlu0 1
    %231 = vperm.xlu0 %230, %v94
    %v232 = vpop.permute.xlu0 %231
    %233 = vset.pattern.permute.xlu0 1
    %234 = vperm.xlu0 %233, %v95
    %v235 = vpop.permute.xlu0 %234
    %236 = vset.pattern.permute.xlu0 1
    %237 = vperm.xlu0 %236, %v96
    %v238 = vpop.permute.xlu0 %237
    %239 = vset.pattern.permute.xlu0 1
    %240 = vperm.xlu0 %239, %v97
    %v241 = vpop.permute.xlu0 %240
    %242 = vset.pattern.permute.xlu0 1
    %243 = vperm.xlu0 %242, %v98
    %v244 = vpop.permute.xlu0 %243
    %245 = vset.pattern.permute.xlu0 1
    %246 = vperm.xlu0 %245, %v99
    %v247 = vpop.permute.xlu0 %246
    %248 = vset.pattern.permute.xlu0 1
    %249 = vperm.xlu0 %248, %v100
    %v250 = vpop.permute.xlu0 %249
    %251 = vset.pattern.permute.xlu0 1
    %252 = vperm.xlu0 %251, %v101
    %v253 = vpop.permute.xlu0 %252
    %254 = vset.pattern.permute.xlu0 1
    %255 = vperm.xlu0 %254, %v102
    %v256 = vpop.permute.xlu0 %255
    %257 = vset.pattern.permute.xlu0 1
    %258 = vperm.xlu0 %257, %v103
    %v259 = vpop.permute.xlu0 %258
    %260 = vset.pattern.permute.xlu0 1
    %261 = vperm.xlu0 %260, %v104
    %v262 = vpop.permute.xlu0 %261
    %263 = vset.pattern.permute.xlu0 1
    %264 = vperm.xlu0 %263, %v105
    %v265 = vpop.permute.xlu0 %264
    %266 = vset.pattern.permute.xlu0 1
    %267 = vperm.xlu0 %266, %v106
    %v268 = vpop.permute.xlu0 %267
    %vm269 = vcmp.eq.s32.totalorder %v223, %v108
    %vm270 = vcmp.eq.s32.totalorder %v226, %v108
    %vm271 = vcmp.eq.s32.totalorder %v229, %v108
    %vm272 = vcmp.eq.s32.totalorder %v232, %v108
    %vm273 = vcmp.eq.s32.totalorder %v235, %v108
    %vm274 = vcmp.eq.s32.totalorder %v238, %v108
    %vm275 = vcmp.eq.s32.totalorder %v241, %v108
    %vm276 = vcmp.eq.s32.totalorder %v244, %v108
    %vm277 = vcmp.eq.s32.totalorder %v247, %v108
    %vm278 = vcmp.eq.s32.totalorder %v250, %v108
    %vm279 = vcmp.eq.s32.totalorder %v253, %v108
    %vm280 = vcmp.eq.s32.totalorder %v256, %v108
    %vm281 = vcmp.eq.s32.totalorder %v259, %v108
    %vm282 = vcmp.eq.s32.totalorder %v262, %v108
    %vm283 = vcmp.eq.s32.totalorder %v265, %v108
    %vm284 = vcmp.eq.s32.totalorder %v268, %v108
    %v285 = vsel %vm269, 1, 0
    %v286 = vsel %vm270, 1, 0
    %v287 = vsel %vm271, 1, 0
    %v288 = vsel %vm272, 1, 0
    %v289 = vsel %vm273, 1, 0
    %v290 = vsel %vm274, 1, 0
    %v291 = vsel %vm275, 1, 0
    %v292 = vsel %vm276, 1, 0
    %v293 = vsel %vm277, 1, 0
    %v294 = vsel %vm278, 1, 0
    %v295 = vsel %vm279, 1, 0
    %v296 = vsel %vm280, 1, 0
    %v297 = vsel %vm281, 1, 0
    %v298 = vsel %vm282, 1, 0
    %v299 = vsel %vm283, 1, 0
    %v300 = vsel %vm284, 1, 0
    %v301 = vcvt.s32.f32 %v285
    %v302 = vcvt.s32.f32 %v286
    %v303 = vcvt.s32.f32 %v287
    %v304 = vcvt.s32.f32 %v288
    %v305 = vcvt.s32.f32 %v289
    %v306 = vcvt.s32.f32 %v290
    %v307 = vcvt.s32.f32 %v291
    %v308 = vcvt.s32.f32 %v292
    %v309 = vcvt.s32.f32 %v293
    %v310 = vcvt.s32.f32 %v294
    %v311 = vcvt.s32.f32 %v295
    %v312 = vcvt.s32.f32 %v296
    %v313 = vcvt.s32.f32 %v297
    %v314 = vcvt.s32.f32 %v298
    %v315 = vcvt.s32.f32 %v299
    %v316 = vcvt.s32.f32 %v300
    %v317 = vadd.f32 %v205, %v301
    %v318 = vadd.f32 %v206, %v302
    %v319 = vadd.f32 %v207, %v303
    %v320 = vadd.f32 %v208, %v304
    %v321 = vadd.f32 %v209, %v305
    %v322 = vadd.f32 %v210, %v306
    %v323 = vadd.f32 %v211, %v307
    %v324 = vadd.f32 %v212, %v308
    %v325 = vadd.f32 %v213, %v309
    %v326 = vadd.f32 %v214, %v310
    %v327 = vadd.f32 %v215, %v311
    %v328 = vadd.f32 %v216, %v312
    %v329 = vadd.f32 %v217, %v313
    %v330 = vadd.f32 %v218, %v314
    %v331 = vadd.f32 %v219, %v315
    %v332 = vadd.f32 %v220, %v316
    %333 = vset.pattern.permute.xlu0 2
    %334 = vperm.xlu0 %333, %v91
    %v335 = vpop.permute.xlu0 %334
    %336 = vset.pattern.permute.xlu0 2
    %337 = vperm.xlu0 %336, %v92
    %v338 = vpop.permute.xlu0 %337
    %339 = vset.pattern.permute.xlu0 2
    %340 = vperm.xlu0 %339, %v93
    %v341 = vpop.permute.xlu0 %340
    %342 = vset.pattern.permute.xlu0 2
    %343 = vperm.xlu0 %342, %v94
    %v344 = vpop.permute.xlu0 %343
    %345 = vset.pattern.permute.xlu0 2
    %346 = vperm.xlu0 %345, %v95
    %v347 = vpop.permute.xlu0 %346
    %348 = vset.pattern.permute.xlu0 2
    %349 = vperm.xlu0 %348, %v96
    %v350 = vpop.permute.xlu0 %349
    %351 = vset.pattern.permute.xlu0 2
    %352 = vperm.xlu0 %351, %v97
    %v353 = vpop.permute.xlu0 %352
    %354 = vset.pattern.permute.xlu0 2
    %355 = vperm.xlu0 %354, %v98
    %v356 = vpop.permute.xlu0 %355
    %357 = vset.pattern.permute.xlu0 2
    %358 = vperm.xlu0 %357, %v99
    %v359 = vpop.permute.xlu0 %358
    %360 = vset.pattern.permute.xlu0 2
    %361 = vperm.xlu0 %360, %v100
    %v362 = vpop.permute.xlu0 %361
    %363 = vset.pattern.permute.xlu0 2
    %364 = vperm.xlu0 %363, %v101
    %v365 = vpop.permute.xlu0 %364
    %366 = vset.pattern.permute.xlu0 2
    %367 = vperm.xlu0 %366, %v102
    %v368 = vpop.permute.xlu0 %367
    %369 = vset.pattern.permute.xlu0 2
    %370 = vperm.xlu0 %369, %v103
    %v371 = vpop.permute.xlu0 %370
    %372 = vset.pattern.permute.xlu0 2
    %373 = vperm.xlu0 %372, %v104
    %v374 = vpop.permute.xlu0 %373
    %375 = vset.pattern.permute.xlu0 2
    %376 = vperm.xlu0 %375, %v105
    %v377 = vpop.permute.xlu0 %376
    %378 = vset.pattern.permute.xlu0 2
    %379 = vperm.xlu0 %378, %v106
    %v380 = vpop.permute.xlu0 %379
    %vm381 = vcmp.eq.s32.totalorder %v335, %v108
    %vm382 = vcmp.eq.s32.totalorder %v338, %v108
    %vm383 = vcmp.eq.s32.totalorder %v341, %v108
    %vm384 = vcmp.eq.s32.totalorder %v344, %v108
    %vm385 = vcmp.eq.s32.totalorder %v347, %v108
    %vm386 = vcmp.eq.s32.totalorder %v350, %v108
    %vm387 = vcmp.eq.s32.totalorder %v353, %v108
    %vm388 = vcmp.eq.s32.totalorder %v356, %v108
    %vm389 = vcmp.eq.s32.totalorder %v359, %v108
    %vm390 = vcmp.eq.s32.totalorder %v362, %v108
    %vm391 = vcmp.eq.s32.totalorder %v365, %v108
    %vm392 = vcmp.eq.s32.totalorder %v368, %v108
    %vm393 = vcmp.eq.s32.totalorder %v371, %v108
    %vm394 = vcmp.eq.s32.totalorder %v374, %v108
    %vm395 = vcmp.eq.s32.totalorder %v377, %v108
    %vm396 = vcmp.eq.s32.totalorder %v380, %v108
    %v397 = vsel %vm381, 1, 0
    %v398 = vsel %vm382, 1, 0
    %v399 = vsel %vm383, 1, 0
    %v400 = vsel %vm384, 1, 0
    %v401 = vsel %vm385, 1, 0
    %v402 = vsel %vm386, 1, 0
    %v403 = vsel %vm387, 1, 0
    %v404 = vsel %vm388, 1, 0
    %v405 = vsel %vm389, 1, 0
    %v406 = vsel %vm390, 1, 0
    %v407 = vsel %vm391, 1, 0
    %v408 = vsel %vm392, 1, 0
    %v409 = vsel %vm393, 1, 0
    %v410 = vsel %vm394, 1, 0
    %v411 = vsel %vm395, 1, 0
    %v412 = vsel %vm396, 1, 0
    %v413 = vcvt.s32.f32 %v397
    %v414 = vcvt.s32.f32 %v398
    %v415 = vcvt.s32.f32 %v399
    %v416 = vcvt.s32.f32 %v400
    %v417 = vcvt.s32.f32 %v401
    %v418 = vcvt.s32.f32 %v402
    %v419 = vcvt.s32.f32 %v403
    %v420 = vcvt.s32.f32 %v404
    %v421 = vcvt.s32.f32 %v405
    %v422 = vcvt.s32.f32 %v406
    %v423 = vcvt.s32.f32 %v407
    %v424 = vcvt.s32.f32 %v408
    %v425 = vcvt.s32.f32 %v409
    %v426 = vcvt.s32.f32 %v410
    %v427 = vcvt.s32.f32 %v411
    %v428 = vcvt.s32.f32 %v412
    %v429 = vadd.f32 %v317, %v413
    %v430 = vadd.f32 %v318, %v414
    %v431 = vadd.f32 %v319, %v415
    %v432 = vadd.f32 %v320, %v416
    %v433 = vadd.f32 %v321, %v417
    %v434 = vadd.f32 %v322, %v418
    %v435 = vadd.f32 %v323, %v419
    %v436 = vadd.f32 %v324, %v420
    %v437 = vadd.f32 %v325, %v421
    %v438 = vadd.f32 %v326, %v422
    %v439 = vadd.f32 %v327, %v423
    %v440 = vadd.f32 %v328, %v424
    %v441 = vadd.f32 %v329, %v425
    %v442 = vadd.f32 %v330, %v426
    %v443 = vadd.f32 %v331, %v427
    %v444 = vadd.f32 %v332, %v428
    %445 = vset.pattern.permute.xlu0 3
    %446 = vperm.xlu0 %445, %v91
    %v447 = vpop.permute.xlu0 %446
    %448 = vset.pattern.permute.xlu0 3
    %449 = vperm.xlu0 %448, %v92
    %v450 = vpop.permute.xlu0 %449
    %451 = vset.pattern.permute.xlu0 3
    %452 = vperm.xlu0 %451, %v93
    %v453 = vpop.permute.xlu0 %452
    %454 = vset.pattern.permute.xlu0 3
    %455 = vperm.xlu0 %454, %v94
    %v456 = vpop.permute.xlu0 %455
    %457 = vset.pattern.permute.xlu0 3
    %458 = vperm.xlu0 %457, %v95
    %v459 = vpop.permute.xlu0 %458
    %460 = vset.pattern.permute.xlu0 3
    %461 = vperm.xlu0 %460, %v96
    %v462 = vpop.permute.xlu0 %461
    %463 = vset.pattern.permute.xlu0 3
    %464 = vperm.xlu0 %463, %v97
    %v465 = vpop.permute.xlu0 %464
    %466 = vset.pattern.permute.xlu0 3
    %467 = vperm.xlu0 %466, %v98
    %v468 = vpop.permute.xlu0 %467
    %469 = vset.pattern.permute.xlu0 3
    %470 = vperm.xlu0 %469, %v99
    %v471 = vpop.permute.xlu0 %470
    %472 = vset.pattern.permute.xlu0 3
    %473 = vperm.xlu0 %472, %v100
    %v474 = vpop.permute.xlu0 %473
    %475 = vset.pattern.permute.xlu0 3
    %476 = vperm.xlu0 %475, %v101
    %v477 = vpop.permute.xlu0 %476
    %478 = vset.pattern.permute.xlu0 3
    %479 = vperm.xlu0 %478, %v102
    %v480 = vpop.permute.xlu0 %479
    %481 = vset.pattern.permute.xlu0 3
    %482 = vperm.xlu0 %481, %v103
    %v483 = vpop.permute.xlu0 %482
    %484 = vset.pattern.permute.xlu0 3
    %485 = vperm.xlu0 %484, %v104
    %v486 = vpop.permute.xlu0 %485
    %487 = vset.pattern.permute.xlu0 3
    %488 = vperm.xlu0 %487, %v105
    %v489 = vpop.permute.xlu0 %488
    %490 = vset.pattern.permute.xlu0 3
    %491 = vperm.xlu0 %490, %v106
    %v492 = vpop.permute.xlu0 %491
    %vm493 = vcmp.eq.s32.totalorder %v447, %v108
    %vm494 = vcmp.eq.s32.totalorder %v450, %v108
    %vm495 = vcmp.eq.s32.totalorder %v453, %v108
    %vm496 = vcmp.eq.s32.totalorder %v456, %v108
    %vm497 = vcmp.eq.s32.totalorder %v459, %v108
    %vm498 = vcmp.eq.s32.totalorder %v462, %v108
    %vm499 = vcmp.eq.s32.totalorder %v465, %v108
    %vm500 = vcmp.eq.s32.totalorder %v468, %v108
    %vm501 = vcmp.eq.s32.totalorder %v471, %v108
    %vm502 = vcmp.eq.s32.totalorder %v474, %v108
    %vm503 = vcmp.eq.s32.totalorder %v477, %v108
    %vm504 = vcmp.eq.s32.totalorder %v480, %v108
    %vm505 = vcmp.eq.s32.totalorder %v483, %v108
    %vm506 = vcmp.eq.s32.totalorder %v486, %v108
    %vm507 = vcmp.eq.s32.totalorder %v489, %v108
    %vm508 = vcmp.eq.s32.totalorder %v492, %v108
    %v509 = vsel %vm493, 1, 0
    %v510 = vsel %vm494, 1, 0
    %v511 = vsel %vm495, 1, 0
    %v512 = vsel %vm496, 1, 0
    %v513 = vsel %vm497, 1, 0
    %v514 = vsel %vm498, 1, 0
    %v515 = vsel %vm499, 1, 0
    %v516 = vsel %vm500, 1, 0
    %v517 = vsel %vm501, 1, 0
    %v518 = vsel %vm502, 1, 0
    %v519 = vsel %vm503, 1, 0
    %v520 = vsel %vm504, 1, 0
    %v521 = vsel %vm505, 1, 0
    %v522 = vsel %vm506, 1, 0
    %v523 = vsel %vm507, 1, 0
    %v524 = vsel %vm508, 1, 0
    %v525 = vcvt.s32.f32 %v509
    %v526 = vcvt.s32.f32 %v510
    %v527 = vcvt.s32.f32 %v511
    %v528 = vcvt.s32.f32 %v512
    %v529 = vcvt.s32.f32 %v513
    %v530 = vcvt.s32.f32 %v514
    %v531 = vcvt.s32.f32 %v515
    %v532 = vcvt.s32.f32 %v516
    %v533 = vcvt.s32.f32 %v517
    %v534 = vcvt.s32.f32 %v518
    %v535 = vcvt.s32.f32 %v519
    %v536 = vcvt.s32.f32 %v520
    %v537 = vcvt.s32.f32 %v521
    %v538 = vcvt.s32.f32 %v522
    %v539 = vcvt.s32.f32 %v523
    %v540 = vcvt.s32.f32 %v524
    %v541 = vadd.f32 %v429, %v525
    %v542 = vadd.f32 %v430, %v526
    %v543 = vadd.f32 %v431, %v527
    %v544 = vadd.f32 %v432, %v528
    %v545 = vadd.f32 %v433, %v529
    %v546 = vadd.f32 %v434, %v530
    %v547 = vadd.f32 %v435, %v531
    %v548 = vadd.f32 %v436, %v532
    %v549 = vadd.f32 %v437, %v533
    %v550 = vadd.f32 %v438, %v534
    %v551 = vadd.f32 %v439, %v535
    %v552 = vadd.f32 %v440, %v536
    %v553 = vadd.f32 %v441, %v537
    %v554 = vadd.f32 %v442, %v538
    %v555 = vadd.f32 %v443, %v539
    %v556 = vadd.f32 %v444, %v540
    %557 = vset.pattern.permute.xlu0 4
    %558 = vperm.xlu0 %557, %v91
    %v559 = vpop.permute.xlu0 %558
    %560 = vset.pattern.permute.xlu0 4
    %561 = vperm.xlu0 %560, %v92
    %v562 = vpop.permute.xlu0 %561
    %563 = vset.pattern.permute.xlu0 4
    %564 = vperm.xlu0 %563, %v93
    %v565 = vpop.permute.xlu0 %564
    %566 = vset.pattern.permute.xlu0 4
    %567 = vperm.xlu0 %566, %v94
    %v568 = vpop.permute.xlu0 %567
    %569 = vset.pattern.permute.xlu0 4
    %570 = vperm.xlu0 %569, %v95
    %v571 = vpop.permute.xlu0 %570
    %572 = vset.pattern.permute.xlu0 4
    %573 = vperm.xlu0 %572, %v96
    %v574 = vpop.permute.xlu0 %573
    %575 = vset.pattern.permute.xlu0 4
    %576 = vperm.xlu0 %575, %v97
    %v577 = vpop.permute.xlu0 %576
    %578 = vset.pattern.permute.xlu0 4
    %579 = vperm.xlu0 %578, %v98
    %v580 = vpop.permute.xlu0 %579
    %581 = vset.pattern.permute.xlu0 4
    %582 = vperm.xlu0 %581, %v99
    %v583 = vpop.permute.xlu0 %582
    %584 = vset.pattern.permute.xlu0 4
    %585 = vperm.xlu0 %584, %v100
    %v586 = vpop.permute.xlu0 %585
    %587 = vset.pattern.permute.xlu0 4
    %588 = vperm.xlu0 %587, %v101
    %v589 = vpop.permute.xlu0 %588
    %590 = vset.pattern.permute.xlu0 4
    %591 = vperm.xlu0 %590, %v102
    %v592 = vpop.permute.xlu0 %591
    %593 = vset.pattern.permute.xlu0 4
    %594 = vperm.xlu0 %593, %v103
    %v595 = vpop.permute.xlu0 %594
    %596 = vset.pattern.permute.xlu0 4
    %597 = vperm.xlu0 %596, %v104
    %v598 = vpop.permute.xlu0 %597
    %599 = vset.pattern.permute.xlu0 4
    %600 = vperm.xlu0 %599, %v105
    %v601 = vpop.permute.xlu0 %600
    %602 = vset.pattern.permute.xlu0 4
    %603 = vperm.xlu0 %602, %v106
    %v604 = vpop.permute.xlu0 %603
    %vm605 = vcmp.eq.s32.totalorder %v559, %v108
    %vm606 = vcmp.eq.s32.totalorder %v562, %v108
    %vm607 = vcmp.eq.s32.totalorder %v565, %v108
    %vm608 = vcmp.eq.s32.totalorder %v568, %v108
    %vm609 = vcmp.eq.s32.totalorder %v571, %v108
    %vm610 = vcmp.eq.s32.totalorder %v574, %v108
    %vm611 = vcmp.eq.s32.totalorder %v577, %v108
    %vm612 = vcmp.eq.s32.totalorder %v580, %v108
    %vm613 = vcmp.eq.s32.totalorder %v583, %v108
    %vm614 = vcmp.eq.s32.totalorder %v586, %v108
    %vm615 = vcmp.eq.s32.totalorder %v589, %v108
    %vm616 = vcmp.eq.s32.totalorder %v592, %v108
    %vm617 = vcmp.eq.s32.totalorder %v595, %v108
    %vm618 = vcmp.eq.s32.totalorder %v598, %v108
    %vm619 = vcmp.eq.s32.totalorder %v601, %v108
    %vm620 = vcmp.eq.s32.totalorder %v604, %v108
    %v621 = vsel %vm605, 1, 0
    %v622 = vsel %vm606, 1, 0
    %v623 = vsel %vm607, 1, 0
    %v624 = vsel %vm608, 1, 0
    %v625 = vsel %vm609, 1, 0
    %v626 = vsel %vm610, 1, 0
    %v627 = vsel %vm611, 1, 0
    %v628 = vsel %vm612, 1, 0
    %v629 = vsel %vm613, 1, 0
    %v630 = vsel %vm614, 1, 0
    %v631 = vsel %vm615, 1, 0
    %v632 = vsel %vm616, 1, 0
    %v633 = vsel %vm617, 1, 0
    %v634 = vsel %vm618, 1, 0
    %v635 = vsel %vm619, 1, 0
    %v636 = vsel %vm620, 1, 0
    %v637 = vcvt.s32.f32 %v621
    %v638 = vcvt.s32.f32 %v622
    %v639 = vcvt.s32.f32 %v623
    %v640 = vcvt.s32.f32 %v624
    %v641 = vcvt.s32.f32 %v625
    %v642 = vcvt.s32.f32 %v626
    %v643 = vcvt.s32.f32 %v627
    %v644 = vcvt.s32.f32 %v628
    %v645 = vcvt.s32.f32 %v629
    %v646 = vcvt.s32.f32 %v630
    %v647 = vcvt.s32.f32 %v631
    %v648 = vcvt.s32.f32 %v632
    %v649 = vcvt.s32.f32 %v633
    %v650 = vcvt.s32.f32 %v634
    %v651 = vcvt.s32.f32 %v635
    %v652 = vcvt.s32.f32 %v636
    %v653 = vadd.f32 %v541, %v637
    %v654 = vadd.f32 %v542, %v638
    %v655 = vadd.f32 %v543, %v639
    %v656 = vadd.f32 %v544, %v640
    %v657 = vadd.f32 %v545, %v641
    %v658 = vadd.f32 %v546, %v642
    %v659 = vadd.f32 %v547, %v643
    %v660 = vadd.f32 %v548, %v644
    %v661 = vadd.f32 %v549, %v645
    %v662 = vadd.f32 %v550, %v646
    %v663 = vadd.f32 %v551, %v647
    %v664 = vadd.f32 %v552, %v648
    %v665 = vadd.f32 %v553, %v649
    %v666 = vadd.f32 %v554, %v650
    %v667 = vadd.f32 %v555, %v651
    %v668 = vadd.f32 %v556, %v652
    %v669 = vld [vmem:[%s5] sm:$0xff]
    %v670 = vld [vmem:[%s5 + $0x8] sm:$0xff]
    %v671 = vld [vmem:[%s5 + $0x10] sm:$0xff]
    %v672 = vld [vmem:[%s5 + $0x18] sm:$0xff]
    %v673 = vld [vmem:[%s5 + $0x20] sm:$0xff]
    %v674 = vld [vmem:[%s5 + $0x28] sm:$0xff]
    %v675 = vld [vmem:[%s5 + $0x30] sm:$0xff]
    %v676 = vld [vmem:[%s5 + $0x38] sm:$0xff]
    %v677 = vld [vmem:[%s5 + $0x40] sm:$0xff]
    %v678 = vld [vmem:[%s5 + $0x48] sm:$0xff]
    %v679 = vld [vmem:[%s5 + $0x50] sm:$0xff]
    %v680 = vld [vmem:[%s5 + $0x58] sm:$0xff]
    %v681 = vld [vmem:[%s5 + $0x60] sm:$0xff]
    %v682 = vld [vmem:[%s5 + $0x68] sm:$0xff]
    %v683 = vld [vmem:[%s5 + $0x70] sm:$0xff]
    %v684 = vld [vmem:[%s5 + $0x78] sm:$0xff]
    %v685 = vld [vmem:[%s41] sm:$0xff]
    %v686 = vld [vmem:[%s41 + $0x8] sm:$0xff]
    %vm687 = vcmask 130048
    %v689 = vsel %vm687, %v653, 0
    %v692 = vsel %vm687, %v654, 0
    %v695 = vsel %vm687, %v655, 0
    %v698 = vsel %vm687, %v656, 0
    %v701 = vsel %vm687, %v657, 0
    %v704 = vsel %vm687, %v658, 0
    %v707 = vsel %vm687, %v659, 0
    %v710 = vsel %vm687, %v660, 0
    %v713 = vsel %vm687, %v661, 0
    %v716 = vsel %vm687, %v662, 0
    %v719 = vsel %vm687, %v663, 0
    %v722 = vsel %vm687, %v664, 0
    %v725 = vsel %vm687, %v665, 0
    %v728 = vsel %vm687, %v666, 0
    %v731 = vsel %vm687, %v667, 0
    %v734 = vsel %vm687, %v668, 0
    %736 = vmatprep.subr.mxu0 0.0
    %737 = vmatpush1.msra.mxu0 %v685
    %738 = vmatprep.subr.mxu0 0.0
    %739 = vmatpush1.msra.mxu0 %v686
    %740 = vmatprep.subr.mxu0 0.0
    %741 = vmatpush1.msra.mxu0 0.0
    %742 = vmatprep.subr.mxu0 0.0
    %743 = vmatpush1.msra.mxu0 0.0
    %744 = vmatprep.subr.mxu0 0.0
    %745 = vmatpush1.msra.mxu0 0.0
    %746 = vmatprep.subr.mxu0 0.0
    %747 = vmatpush1.msra.mxu0 0.0
    %748 = vmatprep.subr.mxu0 0.0
    %749 = vmatpush1.msra.mxu0 0.0
    %750 = vmatprep.subr.mxu0 0.0
    %751 = vmatpush1.msra.mxu0 0.0
    %752 = vmatprep.subr.mxu0 0.0
    %753 = vmatpush1.msra.mxu0 0.0
    %754 = vmatprep.subr.mxu0 0.0
    %755 = vmatpush1.msra.mxu0 0.0
    %756 = vmatprep.subr.mxu0 0.0
    %757 = vmatpush1.msra.mxu0 0.0
    %758 = vmatprep.subr.mxu0 0.0
    %759 = vmatpush1.msra.mxu0 0.0
    %760 = vmatprep.subr.mxu0 0.0
    %761 = vmatpush1.msra.mxu0 0.0
    %762 = vmatprep.subr.mxu0 0.0
    %763 = vmatpush1.msra.mxu0 0.0
    %764 = vmatprep.subr.mxu0 0.0
    %765 = vmatpush1.msra.mxu0 0.0
    %766 = vmatprep.subr.mxu0 0.0
    %767 = vmatpush1.msra.mxu0 0.0
    %768 = vmatprep.subr.mxu0 0.0
    %769 = vmatpush1.msra.mxu0 0.0
    %770 = vmatprep.subr.mxu0 0.0
    %771 = vmatpush1.msra.mxu0 0.0
    %772 = vmatprep.subr.mxu0 0.0
    %773 = vmatpush1.msra.mxu0 0.0
    %774 = vmatprep.subr.mxu0 0.0
    %775 = vmatpush1.msra.mxu0 0.0
    %776 = vmatprep.subr.mxu0 0.0
    %777 = vmatpush1.msra.mxu0 0.0
    %778 = vmatprep.subr.mxu0 0.0
    %779 = vmatpush1.msra.mxu0 0.0
    %780 = vmatprep.subr.mxu0 0.0
    %781 = vmatpush1.msra.mxu0 0.0
    %782 = vmatprep.subr.mxu0 0.0
    %783 = vmatpush1.msra.mxu0 0.0
    %784 = vmatprep.subr.mxu0 0.0
    %785 = vmatpush1.msra.mxu0 0.0
    %786 = vmatprep.subr.mxu0 0.0
    %787 = vmatpush1.msra.mxu0 0.0
    %788 = vmatprep.subr.mxu0 0.0
    %789 = vmatpush1.msra.mxu0 0.0
    %790 = vmatprep.subr.mxu0 0.0
    %791 = vmatpush1.msra.mxu0 0.0
    %792 = vmatprep.subr.mxu0 0.0
    %793 = vmatpush1.msra.mxu0 0.0
    %794 = vmatprep.subr.mxu0 0.0
    %795 = vmatpush1.msra.mxu0 0.0
    %796 = vmatprep.subr.mxu0 0.0
    %797 = vmatpush1.msra.mxu0 0.0
    %798 = vmatprep.subr.mxu0 0.0
    %799 = vmatpush1.msra.mxu0 0.0
    %800 = vmatprep.mubr.f32.mxu0 0.0
    %801 = vmatmul.mubr.f32.gmra.mrb[0].mxu0 %v689
    %v802 = vpop.f32.mrb[0].mxu0
    %v803 = vadd.f32 0.0, %v802
    %v804 = vpop.f32.mrb[0].mxu0
    %805 = vmatprep.mubr.f32.mxu0 0.0
    %806 = vmatmul.mubr.f32.gmra.mrb[0].mxu0 %v692
    %v807 = vpop.f32.mrb[0].mxu0
    %v808 = vadd.f32 0.0, %v807
    %v809 = vpop.f32.mrb[0].mxu0
    %810 = vmatprep.mubr.f32.mxu0 0.0
    %811 = vmatmul.mubr.f32.gmra.mrb[0].mxu0 %v695
    %v812 = vpop.f32.mrb[0].mxu0
    %v813 = vadd.f32 0.0, %v812
    %v814 = vpop.f32.mrb[0].mxu0
    %815 = vmatprep.mubr.f32.mxu0 0.0
    %816 = vmatmul.mubr.f32.gmra.mrb[0].mxu0 %v698
    %v817 = vpop.f32.mrb[0].mxu0
    %v818 = vadd.f32 0.0, %v817
    %v819 = vpop.f32.mrb[0].mxu0
    %820 = vmatprep.mubr.f32.mxu0 0.0
    %821 = vmatmul.mubr.f32.gmra.mrb[0].mxu0 %v701
    %v822 = vpop.f32.mrb[0].mxu0
    %v823 = vadd.f32 0.0, %v822
    %v824 = vpop.f32.mrb[0].mxu0
    %825 = vmatprep.mubr.f32.mxu0 0.0
    %826 = vmatmul.mubr.f32.gmra.mrb[0].mxu0 %v704
    %v827 = vpop.f32.mrb[0].mxu0
    %v828 = vadd.f32 0.0, %v827
    %v829 = vpop.f32.mrb[0].mxu0
    %830 = vmatprep.mubr.f32.mxu0 0.0
    %831 = vmatmul.mubr.f32.gmra.mrb[0].mxu0 %v707
    %v832 = vpop.f32.mrb[0].mxu0
    %v833 = vadd.f32 0.0, %v832
    %v834 = vpop.f32.mrb[0].mxu0
    %835 = vmatprep.mubr.f32.mxu0 0.0
    %836 = vmatmul.mubr.f32.gmra.mrb[0].mxu0 %v710
    %v837 = vpop.f32.mrb[0].mxu0
    %v838 = vadd.f32 0.0, %v837
    %v839 = vpop.f32.mrb[0].mxu0
    %840 = vmatprep.mubr.f32.mxu0 0.0
    %841 = vmatmul.mubr.f32.gmra.mrb[0].mxu0 %v713
    %v842 = vpop.f32.mrb[0].mxu0
    %v843 = vadd.f32 0.0, %v842
    %v844 = vpop.f32.mrb[0].mxu0
    %845 = vmatprep.mubr.f32.mxu0 0.0
    %846 = vmatmul.mubr.f32.gmra.mrb[0].mxu0 %v716
    %v847 = vpop.f32.mrb[0].mxu0
    %v848 = vadd.f32 0.0, %v847
    %v849 = vpop.f32.mrb[0].mxu0
    %850 = vmatprep.mubr.f32.mxu0 0.0
    %851 = vmatmul.mubr.f32.gmra.mrb[0].mxu0 %v719
    %v852 = vpop.f32.mrb[0].mxu0
    %v853 = vadd.f32 0.0, %v852
    %v854 = vpop.f32.mrb[0].mxu0
    %855 = vmatprep.mubr.f32.mxu0 0.0
    %856 = vmatmul.mubr.f32.gmra.mrb[0].mxu0 %v722
    %v857 = vpop.f32.mrb[0].mxu0
    %v858 = vadd.f32 0.0, %v857
    %v859 = vpop.f32.mrb[0].mxu0
    %860 = vmatprep.mubr.f32.mxu0 0.0
    %861 = vmatmul.mubr.f32.gmra.mrb[0].mxu0 %v725
    %v862 = vpop.f32.mrb[0].mxu0
    %v863 = vadd.f32 0.0, %v862
    %v864 = vpop.f32.mrb[0].mxu0
    %865 = vmatprep.mubr.f32.mxu0 0.0
    %866 = vmatmul.mubr.f32.gmra.mrb[0].mxu0 %v728
    %v867 = vpop.f32.mrb[0].mxu0
    %v868 = vadd.f32 0.0, %v867
    %v869 = vpop.f32.mrb[0].mxu0
    %870 = vmatprep.mubr.f32.mxu0 0.0
    %871 = vmatmul.mubr.f32.gmra.mrb[0].mxu0 %v731
    %v872 = vpop.f32.mrb[0].mxu0
    %v873 = vadd.f32 0.0, %v872
    %v874 = vpop.f32.mrb[0].mxu0
    %875 = vmatprep.mubr.f32.mxu0 0.0
    %876 = vmatmul.mubr.f32.gmra.mrb[0].mxu0 %v734
    %v877 = vpop.f32.mrb[0].mxu0
    %v878 = vadd.f32 0.0, %v877
    %v879 = vpop.f32.mrb[0].mxu0
    %880 = vdwg.mxu0
    %v881 = vadd.f32 %v669, %v803
    %v882 = vadd.f32 %v670, %v808
    %v883 = vadd.f32 %v671, %v813
    %v884 = vadd.f32 %v672, %v818
    %v885 = vadd.f32 %v673, %v823
    %v886 = vadd.f32 %v674, %v828
    %v887 = vadd.f32 %v675, %v833
    %v888 = vadd.f32 %v676, %v838
    %v889 = vadd.f32 %v677, %v843
    %v890 = vadd.f32 %v678, %v848
    %v891 = vadd.f32 %v679, %v853
    %v892 = vadd.f32 %v680, %v858
    %v893 = vadd.f32 %v681, %v863
    %v894 = vadd.f32 %v682, %v868
    %v895 = vadd.f32 %v683, %v873
    %v896 = vadd.f32 %v684, %v878
    %vm897 = vcmask 261120
    %898 = vst.msk [vmem:[%s5] sm:$0xff] %vm897, %v881
    %899 = vst.msk [vmem:[%s5 + $0x8] sm:$0xff] %vm897, %v882
    %900 = vst.msk [vmem:[%s5 + $0x10] sm:$0xff] %vm897, %v883
    %901 = vst.msk [vmem:[%s5 + $0x18] sm:$0xff] %vm897, %v884
    %902 = vst.msk [vmem:[%s5 + $0x20] sm:$0xff] %vm897, %v885
    %903 = vst.msk [vmem:[%s5 + $0x28] sm:$0xff] %vm897, %v886
    %904 = vst.msk [vmem:[%s5 + $0x30] sm:$0xff] %vm897, %v887
    %905 = vst.msk [vmem:[%s5 + $0x38] sm:$0xff] %vm897, %v888
    %906 = vst.msk [vmem:[%s5 + $0x40] sm:$0xff] %vm897, %v889
    %907 = vst.msk [vmem:[%s5 + $0x48] sm:$0xff] %vm897, %v890
    %908 = vst.msk [vmem:[%s5 + $0x50] sm:$0xff] %vm897, %v891
    %909 = vst.msk [vmem:[%s5 + $0x58] sm:$0xff] %vm897, %v892
    %910 = vst.msk [vmem:[%s5 + $0x60] sm:$0xff] %vm897, %v893
    %911 = vst.msk [vmem:[%s5 + $0x68] sm:$0xff] %vm897, %v894
    %912 = vst.msk [vmem:[%s5 + $0x70] sm:$0xff] %vm897, %v895
    %913 = vst.msk [vmem:[%s5 + $0x78] sm:$0xff] %vm897, %v896
  $region21: #{tpu_custom_call.1} parent=0 // pred_fallthru
    _
  // Predicated region
  $region22: #{tpu_custom_call.1} parent=0 // pred_check
    %p914 = pneg %p45
  $region23: #{tpu_custom_call.1} parent=0 // pred_check_branch
    %916 = sbr.rel (%p914) target = $region25
  $region24: #{tpu_custom_call.1} parent=0 // pred_region
    %v917 = vld [vmem:[%s5] sm:$0xff]
    %v918 = vld [vmem:[%s5 + $0x8] sm:$0xff]
    %v919 = vld [vmem:[%s5 + $0x10] sm:$0xff]
    %v920 = vld [vmem:[%s5 + $0x18] sm:$0xff]
    %v921 = vld [vmem:[%s5 + $0x20] sm:$0xff]
    %v922 = vld [vmem:[%s5 + $0x28] sm:$0xff]
    %v923 = vld [vmem:[%s5 + $0x30] sm:$0xff]
    %v924 = vld [vmem:[%s5 + $0x38] sm:$0xff]
    %v925 = vld [vmem:[%s5 + $0x40] sm:$0xff]
    %v926 = vld [vmem:[%s5 + $0x48] sm:$0xff]
    %v927 = vld [vmem:[%s5 + $0x50] sm:$0xff]
    %v928 = vld [vmem:[%s5 + $0x58] sm:$0xff]
    %v929 = vld [vmem:[%s5 + $0x60] sm:$0xff]
    %v930 = vld [vmem:[%s5 + $0x68] sm:$0xff]
    %v931 = vld [vmem:[%s5 + $0x70] sm:$0xff]
    %v932 = vld [vmem:[%s5 + $0x78] sm:$0xff]
    %v933 = vld [vmem:[%s3] sm:$0xff]
    %v934 = vld [vmem:[%s3 + $0x8] sm:$0xff]
    %v935 = vld [vmem:[%s3 + $0x10] sm:$0xff]
    %v936 = vld [vmem:[%s3 + $0x18] sm:$0xff]
    %v937 = vld [vmem:[%s3 + $0x20] sm:$0xff]
    %v938 = vld [vmem:[%s3 + $0x28] sm:$0xff]
    %v939 = vld [vmem:[%s3 + $0x30] sm:$0xff]
    %v940 = vld [vmem:[%s3 + $0x38] sm:$0xff]
    %v941 = vld [vmem:[%s3 + $0x40] sm:$0xff]
    %v942 = vld [vmem:[%s3 + $0x48] sm:$0xff]
    %v943 = vld [vmem:[%s3 + $0x50] sm:$0xff]
    %v944 = vld [vmem:[%s3 + $0x58] sm:$0xff]
    %v945 = vld [vmem:[%s3 + $0x60] sm:$0xff]
    %v946 = vld [vmem:[%s3 + $0x68] sm:$0xff]
    %v947 = vld [vmem:[%s3 + $0x70] sm:$0xff]
    %v948 = vld [vmem:[%s3 + $0x78] sm:$0xff]
    %950 = vset.pattern.permute.xlu0 0
    %951 = vperm.xlu0 %950, %v933
    %v952 = vpop.permute.xlu0 %951
    %955 = vset.pattern.permute.xlu0 0
    %956 = vperm.xlu0 %955, %v934
    %v957 = vpop.permute.xlu0 %956
    %960 = vset.pattern.permute.xlu0 0
    %961 = vperm.xlu0 %960, %v935
    %v962 = vpop.permute.xlu0 %961
    %965 = vset.pattern.permute.xlu0 0
    %966 = vperm.xlu0 %965, %v936
    %v967 = vpop.permute.xlu0 %966
    %970 = vset.pattern.permute.xlu0 0
    %971 = vperm.xlu0 %970, %v937
    %v972 = vpop.permute.xlu0 %971
    %975 = vset.pattern.permute.xlu0 0
    %976 = vperm.xlu0 %975, %v938
    %v977 = vpop.permute.xlu0 %976
    %980 = vset.pattern.permute.xlu0 0
    %981 = vperm.xlu0 %980, %v939
    %v982 = vpop.permute.xlu0 %981
    %985 = vset.pattern.permute.xlu0 0
    %986 = vperm.xlu0 %985, %v940
    %v987 = vpop.permute.xlu0 %986
    %990 = vset.pattern.permute.xlu0 0
    %991 = vperm.xlu0 %990, %v941
    %v992 = vpop.permute.xlu0 %991
    %995 = vset.pattern.permute.xlu0 0
    %996 = vperm.xlu0 %995, %v942
    %v997 = vpop.permute.xlu0 %996
    %1000 = vset.pattern.permute.xlu0 0
    %1001 = vperm.xlu0 %1000, %v943
    %v1002 = vpop.permute.xlu0 %1001
    %1005 = vset.pattern.permute.xlu0 0
    %1006 = vperm.xlu0 %1005, %v944
    %v1007 = vpop.permute.xlu0 %1006
    %1010 = vset.pattern.permute.xlu0 0
    %1011 = vperm.xlu0 %1010, %v945
    %v1012 = vpop.permute.xlu0 %1011
    %1015 = vset.pattern.permute.xlu0 0
    %1016 = vperm.xlu0 %1015, %v946
    %v1017 = vpop.permute.xlu0 %1016
    %1020 = vset.pattern.permute.xlu0 0
    %1021 = vperm.xlu0 %1020, %v947
    %v1022 = vpop.permute.xlu0 %1021
    %1025 = vset.pattern.permute.xlu0 0
    %1026 = vperm.xlu0 %1025, %v948
    %v1027 = vpop.permute.xlu0 %1026
    %v1029 = vmul.f32 %v917, %v952
    %v1030 = vmul.f32 %v918, %v957
    %v1031 = vmul.f32 %v919, %v962
    %v1032 = vmul.f32 %v920, %v967
    %v1033 = vmul.f32 %v921, %v972
    %v1034 = vmul.f32 %v922, %v977
    %v1035 = vmul.f32 %v923, %v982
    %v1036 = vmul.f32 %v924, %v987
    %v1037 = vmul.f32 %v925, %v992
    %v1038 = vmul.f32 %v926, %v997
    %v1039 = vmul.f32 %v927, %v1002
    %v1040 = vmul.f32 %v928, %v1007
    %v1041 = vmul.f32 %v929, %v1012
    %v1042 = vmul.f32 %v930, %v1017
    %v1043 = vmul.f32 %v931, %v1022
    %v1044 = vmul.f32 %v932, %v1027
    %vm1045 = vcmask 261120
    %1046 = vst.msk [vmem:[%s5] sm:$0xff] %vm1045, %v1029
    %1047 = vst.msk [vmem:[%s5 + $0x8] sm:$0xff] %vm1045, %v1030
    %1048 = vst.msk [vmem:[%s5 + $0x10] sm:$0xff] %vm1045, %v1031
    %1049 = vst.msk [vmem:[%s5 + $0x18] sm:$0xff] %vm1045, %v1032
    %1050 = vst.msk [vmem:[%s5 + $0x20] sm:$0xff] %vm1045, %v1033
    %1051 = vst.msk [vmem:[%s5 + $0x28] sm:$0xff] %vm1045, %v1034
    %1052 = vst.msk [vmem:[%s5 + $0x30] sm:$0xff] %vm1045, %v1035
    %1053 = vst.msk [vmem:[%s5 + $0x38] sm:$0xff] %vm1045, %v1036
    %1054 = vst.msk [vmem:[%s5 + $0x40] sm:$0xff] %vm1045, %v1037
    %1055 = vst.msk [vmem:[%s5 + $0x48] sm:$0xff] %vm1045, %v1038
    %1056 = vst.msk [vmem:[%s5 + $0x50] sm:$0xff] %vm1045, %v1039
    %1057 = vst.msk [vmem:[%s5 + $0x58] sm:$0xff] %vm1045, %v1040
    %1058 = vst.msk [vmem:[%s5 + $0x60] sm:$0xff] %vm1045, %v1041
    %1059 = vst.msk [vmem:[%s5 + $0x68] sm:$0xff] %vm1045, %v1042
    %1060 = vst.msk [vmem:[%s5 + $0x70] sm:$0xff] %vm1045, %v1043
    %1061 = vst.msk [vmem:[%s5 + $0x78] sm:$0xff] %vm1045, %v1044
  $region25: #{tpu_custom_call.1} parent=0 // pred_fallthru
    _
  // Predicated region
  $region26: #{tpu_custom_call.1} parent=0 // pred_check
    _
  $region27: #{tpu_custom_call.1} parent=0 // pred_check_branch
    %1063 = sbr.rel (0) target = $region29
  $region28: #{tpu_custom_call.1} parent=0 // pred_region
    _
  $region29: #{tpu_custom_call.1} parent=0 // pred_fallthru
    _
  // Predicated region
  $region30: #{tpu_custom_call.1} parent=0 // pred_check
    _
  $region31: #{tpu_custom_call.1} parent=0 // pred_check_branch
    %1065 = sbr.rel (0) target = $region33
  $region32: #{tpu_custom_call.1} parent=0 // pred_region
    _
  $region33: #{tpu_custom_call.1} parent=0 // pred_fallthru
    _

</llo_original>
